<compile_context>
chip_gen: v6e
topology: v6e:2x2x1
jax: 0.10.0
libtpu: 0.0.40
codegen_flags: <defaults>
</compile_context>

<pallas_src>
import functools

import jax
import jax.numpy as jnp
import numpy as np
from jax import lax
from jax.experimental import pallas as pl
from jax.experimental.pallas import tpu as pltpu

_MIB = 1024 * 1024


def _round_up(v, m):
    return ((v + m - 1) // m) * m


def _vmem_capacity_bytes():
    """Physical VMEM per TensorCore; conservative (v7x-sized) fallback."""
    try:
        cap = int(getattr(pltpu.get_tpu_info(), "vmem_capacity_bytes", 0))
        if cap > 0:
            return cap
    except Exception:
        pass
    return 64 * _MIB


def _multi_tensorcore_chip():
    """Best-effort: does this chip have >1 TensorCore per device (v7x)?"""
    try:
        kind = jax.devices()[0].device_kind.lower()
    except Exception:
        kind = ""
    return ("v7" in kind) or ("7x" in kind)


def _dimension_semantics(batch_grid, n_reduce_axes):
    if (_multi_tensorcore_chip() and hasattr(pltpu, "CORE_PARALLEL")
            and batch_grid >= 2):
        return (pltpu.CORE_PARALLEL,) + (pltpu.ARBITRARY,) * n_reduce_axes
    return ("parallel",) + ("arbitrary",) * n_reduce_axes


def _choose_tiles(batch, f, vmem_cap):
    """Pick (TB, TK, use_f_tiling) from the per-generation VMEM capacity."""
    x_budget = int(0.35 * vmem_cap)        # budget for double-buffered x tiles
    tile_cap_bytes = 16 * _MIB             # single-tile ceiling (roofline plateau)
    row_bytes = f * 4

    # Path A (full-F blocks): viable if a decent batch tile plus the resident
    # (1, F) weight row fit comfortably in VMEM.
    full_f_ok = (2 * 256 * row_bytes <= x_budget) and (row_bytes <= vmem_cap // 8)
    if full_f_ok:
        tb = 4096
        while tb > 8 and (2 * tb * row_bytes > x_budget
                          or tb * row_bytes > tile_cap_bytes):
            tb //= 2
        tb = max(tb, 8)
        if tb >= batch:          # single block; block dims == array dims
            tb = batch
        return tb, f, False

    # Path B (large F): 2-D tiling with an f32 accumulator over the F axis.
    tb = 512
    if tb >= batch:
        tb = batch
    tk = 512 * 128
    while tk > 128 and 2 * max(tb, 8) * tk * 4 > x_budget:
        tk //= 2
    tk = max(tk, 128)
    tk = min(tk, _round_up(f, 128))
    return tb, tk, True


def _fc_kernel_full(x_ref, w_ref, b_ref, o_ref):
    # x_ref: (TB, F) VMEM, w_ref: (1, F) VMEM (resident), b_ref: (1, 1) SMEM,
    # o_ref: (TB, 1) VMEM.  VPU multiply + XLU lane reduce, f32 accumulate.
    x = x_ref[...].astype(jnp.float32)
    w = w_ref[...].astype(jnp.float32)
    acc = jnp.sum(x * w, axis=-1, keepdims=True)
    o_ref[...] = (acc + b_ref[0, 0]).astype(o_ref.dtype)


def _fc_kernel_tiled(x_ref, w_ref, b_ref, o_ref, acc_ref, *, f_total, tk):
    # Grid = (batch tiles, F tiles); innermost F axis is a reduction.
    k = pl.program_id(1)

    @pl.when(k == 0)
    def _():
        acc_ref[...] = jnp.zeros_like(acc_ref)

    x = x_ref[...].astype(jnp.float32)
    w = w_ref[...].astype(jnp.float32)
    # Mask the ragged tail of the feature axis on the (partial) last K block.
    lane = lax.broadcasted_iota(jnp.int32, x.shape, dimension=1)
    valid = (k * tk + lane) < f_total
    acc_ref[...] += jnp.sum(jnp.where(valid, x * w, 0.0), axis=-1, keepdims=True)

    @pl.when(k == pl.num_programs(1) - 1)
    def _():
        o_ref[...] = (acc_ref[...] + b_ref[0, 0]).astype(o_ref.dtype)


@jax.jit
def layer1_fc_forward(x, weight, bias):
    """Forward pass of Layer1FC.

    x:      (B, C, H, W) float32   (PyTorch NCHW layout)
    weight: (1, F) float32, F = C*H*W  (PyTorch nn.Linear weight)
    bias:   (1,)  float32
    returns (B, 1) float32
    """
    B = x.shape[0]
    F = int(np.prod(x.shape[1:]))

    x_flat = x.reshape(B, F)       # matches torch x.flatten(1); layout no-op
    w_row = weight.reshape(1, F)
    b2d = bias.reshape(1, 1)

    vmem_cap = _vmem_capacity_bytes()
    vmem_limit_cap = int(0.85 * vmem_cap)
    TB, TK, use_f_tiling = _choose_tiles(B, F, vmem_cap)
    nb = pl.cdiv(B, TB)

    if not use_f_tiling:
        # Double-buffered x tiles + resident weight row + output + slack.
        need = 2 * TB * F * 4 + 2 * F * 4 + 4 * TB * 4 + _MIB
        vmem_limit = int(min(max(need * 3 // 2, 32 * _MIB), vmem_limit_cap))
        out = pl.pallas_call(
            _fc_kernel_full,
            out_shape=jax.ShapeDtypeStruct((B, 1), x.dtype),
            grid=(nb,),
            in_specs=[
                # Streamed activation tiles (full-F blocks, no padding of x).
                pl.BlockSpec((TB, F), lambda i: (i, 0)),
                # Lane-dense weight row, constant block index -> VMEM-resident.
                pl.BlockSpec((1, F), lambda i: (0, 0)),
                # Scalar bias in SMEM.
                pl.BlockSpec(memory_space=pltpu.MemorySpace.SMEM),
            ],
            out_specs=pl.BlockSpec((TB, 1), lambda i: (i, 0)),
            compiler_params=pltpu.CompilerParams(
                dimension_semantics=_dimension_semantics(int(nb), 0),
                vmem_limit_bytes=vmem_limit,
            ),
        )(x_flat, w_row, b2d)
    else:
        nk = pl.cdiv(F, TK)
        need = 2 * TB * TK * 4 + 2 * TK * 4 + 4 * TB * 4 + TB * 4 + _MIB
        vmem_limit = int(min(max(need * 3 // 2, 32 * _MIB), vmem_limit_cap))
        kernel = functools.partial(_fc_kernel_tiled, f_total=F, tk=TK)
        out = pl.pallas_call(
            kernel,
            out_shape=jax.ShapeDtypeStruct((B, 1), x.dtype),
            grid=(nb, nk),
            in_specs=[
                pl.BlockSpec((TB, TK), lambda i, k: (i, k)),
                pl.BlockSpec((1, TK), lambda i, k: (0, k)),
                pl.BlockSpec(memory_space=pltpu.MemorySpace.SMEM),
            ],
            out_specs=pl.BlockSpec((TB, 1), lambda i, k: (i, 0)),
            scratch_shapes=[pltpu.VMEM((TB, 1), jnp.float32)],
            compiler_params=pltpu.CompilerParams(
                dimension_semantics=_dimension_semantics(int(nb), 1),
                vmem_limit_bytes=vmem_limit,
            ),
        )(x_flat, w_row, b2d)

    return out


if __name__ == "__main__":
    # input_size_x_feature = (C, H, W) = (4, 16, 16)  ->  F = 1024
    B, C, H, W = 2, 4, 16, 16
    F = C * H * W

    key = jax.random.PRNGKey(0)
    kx, kw, kb = jax.random.split(key, 3)

    x = jax.random.normal(kx, (B, C, H, W), dtype=jnp.float32)

    # Deterministic params mimicking nn.Linear's default U(-1/sqrt(F), 1/sqrt(F)).
    bound = 1.0 / np.sqrt(F)
    weight = jax.random.uniform(kw, (1, F), minval=-bound, maxval=bound,
                                dtype=jnp.float32)
    bias = jax.random.uniform(kb, (1,), minval=-bound, maxval=bound,
                              dtype=jnp.float32)

    out = layer1_fc_forward(x, weight, bias)
    out = jax.block_until_ready(out)

    # Reference check in plain JAX (same math: flatten -> x @ W.T + b).
    ref = x.reshape(B, F) @ weight.T + bias
    np.testing.assert_allclose(np.asarray(out), np.asarray(ref),
                               rtol=1e-5, atol=1e-5)
    assert out.shape == (B, 1)

    print("KERNEL_OK")
</pallas_src>

<mosaic_0001>
module attributes {stable_mosaic.version = 11 : i64} {
  func.func @_fc_kernel_full(%arg0: i32, %arg1: memref<2x1024xf32, #tpu.memory_space<vmem>>, %arg2: memref<1x1024xf32, #tpu.memory_space<vmem>>, %arg3: memref<1x1xf32, #tpu.memory_space<smem>>, %arg4: memref<2x1xf32, #tpu.memory_space<vmem>>) attributes {dimension_semantics = [#tpu.dimension_semantics<parallel>], iteration_bounds = array<i64: 1>, scalar_prefetch = 0 : i64, scratch_operands = 0 : i64, tpu.core_type = #tpu.core_type<tc>, window_params = [{transform_indices = @transform_0, window_bounds = array<i64: 2, 1024>}, {pipeline_mode = #tpu.pipeline_mode<synchronous>, transform_indices = @transform_1, window_bounds = array<i64: 1, 1024>}, {transform_indices = @transform_2, window_bounds = array<i64: 1, 1>}, {transform_indices = @transform_3, window_bounds = array<i64: 2, 1>}]} {
    %c0 = arith.constant 0 : index
    %c0_0 = arith.constant 0 : index
    %0 = vector.load %arg1[%c0, %c0_0] : memref<2x1024xf32, #tpu.memory_space<vmem>>, vector<2x1024xf32>
    %c0_1 = arith.constant 0 : index
    %c0_2 = arith.constant 0 : index
    %1 = vector.load %arg2[%c0_1, %c0_2] : memref<1x1024xf32, #tpu.memory_space<vmem>>, vector<1x1024xf32>
    %2 = vector.broadcast %1 : vector<1x1024xf32> to vector<2x1024xf32>
    %3 = arith.mulf %0, %2 : vector<2x1024xf32>
    %cst = arith.constant dense<0.000000e+00> : vector<2xf32>
    %4 = vector.multi_reduction <add>, %3, %cst [1] : vector<2x1024xf32> to vector<2xf32>
    %5 = vector.shape_cast %4 : vector<2xf32> to vector<2x1xf32>
    %c0_3 = arith.constant 0 : index
    %c0_4 = arith.constant 0 : index
    %6 = memref.load %arg3[%c0_3, %c0_4] : memref<1x1xf32, #tpu.memory_space<smem>>
    %7 = vector.broadcast %6 : f32 to vector<2x1xf32>
    %8 = arith.addf %5, %7 : vector<2x1xf32>
    %c0_5 = arith.constant 0 : index
    %c0_6 = arith.constant 0 : index
    %9 = vector.load %arg4[%c0_5, %c0_6] : memref<2x1xf32, #tpu.memory_space<vmem>>, vector<2x1xf32>
    tpu.vector_store %arg4[%c0_5, %c0_6], %8 {strides = array<i32>} : memref<2x1xf32, #tpu.memory_space<vmem>>, vector<2x1xf32>,
    return
  }
  func.func @transform_0(%arg0: i32) -> (i32, i32) {
    %c0_i32 = arith.constant 0 : i32
    %c0_i32_0 = arith.constant 0 : i32
    return %arg0, %c0_i32 : i32, i32
  }
  func.func @transform_1(%arg0: i32) -> (i32, i32) {
    %c0_i32 = arith.constant 0 : i32
    %c0_i32_0 = arith.constant 0 : i32
    %c0_i32_1 = arith.constant 0 : i32
    return %c0_i32, %c0_i32_0 : i32, i32
  }
  func.func @transform_2(%arg0: i32) -> (i32, i32) {
    %c0_i32 = arith.constant 0 : i32
    %c0_i32_0 = arith.constant 0 : i32
    %c0_i32_1 = arith.constant 0 : i32
    return %c0_i32, %c0_i32_0 : i32, i32
  }
  func.func @transform_3(%arg0: i32) -> (i32, i32) {
    %c0_i32 = arith.constant 0 : i32
    %c0_i32_0 = arith.constant 0 : i32
    return %arg0, %c0_i32 : i32, i32
  }
}

</mosaic_0001>

<llo_original>
// kernel: layer1_fc_forward.1
$region0: #{layer1_fc_forward.1}
  #allocation0 [shape = 'u32[]', space=smem, size = 0x4, offset = 0x4, fixed_abs, tag = 'smem constant byte address 0x4 - core index']
  #allocation1 [shape = 'u32[144,128]{1,0:T(1,128)}', space=vmem, size = 0x12000, scoped, tag = 'internal scratch']
  #allocation2 [shape = 'f32[1,1]{1,0:T(1,128)S(6)}', space=smem, size = 0x200, scoped, tag = 'scoped memory for layer1_fc_forward.1']
  %s0 = inlined_call_operand.vmem [shape: f32[2,1024], index: 0, kind: input, shape index: {}]
  %s1 = inlined_call_operand.vmem [shape: f32[1,1024], index: 1, kind: input, shape index: {}]
  %s2 = inlined_call_operand.<no memory space> [shape: f32[1,1], index: 2, kind: input, shape index: {}]
  %s3 = inlined_call_operand.vmem [shape: f32[2,1], index: 3, kind: output, shape index: {}]
  %s4 = sld [smem:[#allocation0]]
  $region22: #{layer1_fc_forward.1} parent=0
    _
  %s6 = ssub.s32 1, %s4
  %s7 = scalar_select 0, %s6, %s4
  %8 = sst [smem:[#allocation2]] %s2
  // Predicated region
  $region2: #{layer1_fc_forward.1} parent=0 // pred_check
    _
  $region3: #{layer1_fc_forward.1} parent=0 // pred_check_branch
    %10 = sbr.rel (0) target = $region5
  $region4: #{layer1_fc_forward.1} parent=0 // pred_region
    _
  $region5: #{layer1_fc_forward.1} parent=0 // pred_fallthru
    _
  // Predicated region
  $region6: #{layer1_fc_forward.1} parent=0 // pred_check
    _
  $region7: #{layer1_fc_forward.1} parent=0 // pred_check_branch
    %12 = sbr.rel (0) target = $region9
  $region8: #{layer1_fc_forward.1} parent=0 // pred_region
    _
  $region9: #{layer1_fc_forward.1} parent=0 // pred_fallthru
    _
  // Predicated region
  $region10: #{layer1_fc_forward.1} parent=0 // pred_check
    _
  $region11: #{layer1_fc_forward.1} parent=0 // pred_check_branch
    %14 = sbr.rel (0) target = $region13
  $region12: #{layer1_fc_forward.1} parent=0 // pred_region
    _
  $region13: #{layer1_fc_forward.1} parent=0 // pred_fallthru
    _
  %v15 = vld [vmem:[%s0] sm:$0xff]
  %v16 = vld [vmem:[%s0 + $0x8] sm:$0xff]
  %v17 = vld [vmem:[%s1] sm:$0xff]
  %v19 = vlaneseq
  %v20 = vshrl.u32 %v19, 7
  %v21 = vsub.s32 0, %v20
  %v22 = vrot.slane %v17, %v21
  %v23 = vlaneseq
  %v24 = vshrl.u32 %v23, 7
  %v25 = vsub.s32 1, %v24
  %v26 = vrot.slane %v17, %v25
  %v27 = vlaneseq
  %v28 = vshrl.u32 %v27, 7
  %v29 = vsub.s32 2, %v28
  %v30 = vrot.slane %v17, %v29
  %v31 = vlaneseq
  %v32 = vshrl.u32 %v31, 7
  %v33 = vsub.s32 3, %v32
  %v34 = vrot.slane %v17, %v33
  %v35 = vlaneseq
  %v36 = vshrl.u32 %v35, 7
  %v37 = vsub.s32 4, %v36
  %v38 = vrot.slane %v17, %v37
  %v39 = vlaneseq
  %v40 = vshrl.u32 %v39, 7
  %v41 = vsub.s32 5, %v40
  %v42 = vrot.slane %v17, %v41
  %v43 = vlaneseq
  %v44 = vshrl.u32 %v43, 7
  %v45 = vsub.s32 6, %v44
  %v46 = vrot.slane %v17, %v45
  %v47 = vlaneseq
  %v48 = vshrl.u32 %v47, 7
  %v49 = vsub.s32 7, %v48
  %v50 = vrot.slane %v17, %v49
  %v51 = vcombine.low %v22, %v26
  %v52 = vcombine.low %v30, %v34
  %v54 = vunpack.c.l.s4 1983009808
  %v55 = vunpack.c.0.s8 %v54
  %v56 = vlaneseq
  %v57 = vshrl.u32 %v56, 7
  %v58 = vsub.s32 %v55, %v57
  %v59 = vrot.slane %v51, %v58
  %v61 = vunpack.c.l.s4 1983009808
  %v62 = vunpack.c.0.s8 %v61
  %v63 = vlaneseq
  %v64 = vshrl.u32 %v63, 7
  %v65 = vsub.s32 %v62, %v64
  %v66 = vrot.slane %v52, %v65
  %v67 = vcombine.low %v59, %v66
  %v68 = vcombine.low %v38, %v42
  %v69 = vcombine.low %v46, %v50
  %v71 = vunpack.c.l.s4 1983009808
  %v72 = vunpack.c.0.s8 %v71
  %v73 = vlaneseq
  %v74 = vshrl.u32 %v73, 7
  %v75 = vsub.s32 %v72, %v74
  %v76 = vrot.slane %v68, %v75
  %v78 = vunpack.c.l.s4 1983009808
  %v79 = vunpack.c.0.s8 %v78
  %v80 = vlaneseq
  %v81 = vshrl.u32 %v80, 7
  %v82 = vsub.s32 %v79, %v81
  %v83 = vrot.slane %v69, %v82
  %v84 = vcombine.low %v76, %v83
  %v87 = vmul.f32 %v15, %v67
  %v88 = vmul.f32 %v16, %v84
  %v91 = vcombine.high %v87, %v87
  %v93 = vunpack.c.l.s4 1983009808
  %v94 = vunpack.c.0.s8 %v93
  %v95 = vlaneseq
  %v96 = vshrl.u32 %v95, 7
  %v97 = vsub.s32 %v94, %v96
  %v98 = vrot.slane %v87, %v97
  %v100 = vunpack.c.l.s4 1983009808
  %v101 = vunpack.c.0.s8 %v100
  %v102 = vlaneseq
  %v103 = vshrl.u32 %v102, 7
  %v104 = vsub.s32 %v101, %v103
  %v105 = vrot.slane %v91, %v104
  %v106 = vcombine.high %v98, %v98
  %v107 = vcombine.high %v105, %v105
  %v108 = vcombine.high %v88, %v88
  %v110 = vunpack.c.l.s4 1983009808
  %v111 = vunpack.c.0.s8 %v110
  %v112 = vlaneseq
  %v113 = vshrl.u32 %v112, 7
  %v114 = vsub.s32 %v111, %v113
  %v115 = vrot.slane %v88, %v114
  %v117 = vunpack.c.l.s4 1983009808
  %v118 = vunpack.c.0.s8 %v117
  %v119 = vlaneseq
  %v120 = vshrl.u32 %v119, 7
  %v121 = vsub.s32 %v118, %v120
  %v122 = vrot.slane %v108, %v121
  %v123 = vcombine.high %v115, %v115
  %v124 = vcombine.high %v122, %v122
  %vm133 = vcmask 1041408
  %v134 = vsel %vm133, %v98, 0.0
  %v135 = vsel %vm133, %v106, 0.0
  %v136 = vadd.f32 %v134, %v135
  %v137 = vsel %vm133, %v105, 0.0
  %v138 = vadd.f32 %v136, %v137
  %v139 = vsel %vm133, %v107, 0.0
  %v140 = vadd.f32 %v138, %v139
  %v141 = vsel %vm133, %v115, 0.0
  %v142 = vadd.f32 %v140, %v141
  %v143 = vsel %vm133, %v123, 0.0
  %v144 = vadd.f32 %v142, %v143
  %v145 = vsel %vm133, %v122, 0.0
  %v146 = vadd.f32 %v144, %v145
  %v147 = vsel %vm133, %v124, 0.0
  %v148 = vadd.f32 %v146, %v147
  %149 = vadd.xlane.f32.xlu0 %v148
  %v150 = vpop.xlane.xlu0 %149
  %s151 = sld [smem:[#allocation2]]
  %v152 = vstv %s151
  %v153 = vadd.f32 %v150, %v152
  %vm154 = vcmask 1024
  %155 = vst.msk [vmem:[%s3] sm:$0x3] %vm154, %v153
  // Predicated region
  $region14: #{layer1_fc_forward.1} parent=0 // pred_check
    _
  $region15: #{layer1_fc_forward.1} parent=0 // pred_check_branch
    %157 = sbr.rel (0) target = $region17
  $region16: #{layer1_fc_forward.1} parent=0 // pred_region
    _
  $region17: #{layer1_fc_forward.1} parent=0 // pred_fallthru
    _
  // Predicated region
  $region18: #{layer1_fc_forward.1} parent=0 // pred_check
    _
  $region19: #{layer1_fc_forward.1} parent=0 // pred_check_branch
    %159 = sbr.rel (0) target = $region21
  $region20: #{layer1_fc_forward.1} parent=0 // pred_region
    _
  $region21: #{layer1_fc_forward.1} parent=0 // pred_fallthru
    _

</llo_original>
